<compile_context>
chip_gen: v5e
topology: v5e:2x2
jax: 0.10.0
libtpu: 0.0.40
codegen_flags: <defaults>
</compile_context>

<pallas_src>
import functools

import jax
import jax.numpy as jnp
from jax import lax
from jax.experimental import pallas as pl
from jax.experimental.pallas import tpu as pltpu


def _round_up(x, m):
    return (x + m - 1) // m * m


def _focal_loss_kernel(x_ref, t_ref, a_ref, o_ref, *, gamma, n_valid):
    # x_ref : (C, TN)  logits tile (classes in sublanes, samples in lanes)
    # t_ref : (1, TN)  int32 target class per sample
    # a_ref : (C, 1)   per-class alpha weights (ones when alpha is None)
    # o_ref : (1, 1)   partial loss sum for this (batch, tile) grid step
    x = x_ref[...].astype(jnp.float32)                        # (C, TN)
    t = t_ref[...]                                            # (1, TN) i32
    C, tn = x.shape

    # --- log-softmax over the class axis (numerically stable) ---
    m = jnp.max(x, axis=0, keepdims=True)                     # (1, TN)
    e = jnp.exp(x - m)                                        # (C, TN)
    sum_e = jnp.sum(e, axis=0, keepdims=True)                 # (1, TN)
    lse = m + jnp.log(sum_e)                                  # (1, TN)

    # --- "gather" target logit / exp / alpha via a one-hot mask (VPU only) ---
    onehot = lax.broadcasted_iota(jnp.int32, (C, tn), 0) == t               # (C, TN)
    x_t = jnp.sum(jnp.where(onehot, x, 0.0), axis=0, keepdims=True)          # (1, TN)
    e_t = jnp.sum(jnp.where(onehot, e, 0.0), axis=0, keepdims=True)          # (1, TN)
    a_t = jnp.sum(jnp.where(onehot, a_ref[...].astype(jnp.float32), 0.0),
                  axis=0, keepdims=True)                                     # (1, TN)

    logpt = x_t - lse                                         # (1, TN), <= 0
    pt = jnp.minimum(e_t / sum_e, 1.0)                        # reuse exp; clamp for float gamma
    loss = -((1.0 - pt) ** gamma) * (logpt * a_t)             # (1, TN)

    # --- mask the ragged tail of the last tile, then reduce to a partial sum ---
    col = pl.program_id(1) * tn + lax.broadcasted_iota(jnp.int32, (1, tn), 1)
    loss = jnp.where(col < n_valid, loss, 0.0)
    o_ref[...] = jnp.sum(loss, axis=1, keepdims=True)         # (1, 1)


def focal_loss(logits, target, *, gamma=2, alpha=None, size_average=True,
               tile_hw=65536):
    """Pallas TPU forward of the PyTorch FocalLoss module."""
    if logits.ndim > 2:
        # NCHW (or NCD...) logits: (N, C, HW) view is free (contiguous reshape)
        # and each batch slab is exactly the class-major layout the kernel wants.
        N, C = logits.shape[0], logits.shape[1]
        x3 = logits.reshape(N, C, -1)
        t3 = target.reshape(N, 1, -1).astype(jnp.int32)
    else:
        # Plain (N, C) classification: small case, one cheap transpose.
        Nr, C = logits.shape
        x3 = logits.T.reshape(1, C, Nr)
        t3 = target.reshape(1, 1, Nr).astype(jnp.int32)
    Nb, _, HW = x3.shape
    n_rows = Nb * HW

    # alpha handling mirrors the module: float -> [a, 1-a]; list -> tensor.
    if alpha is None:
        alpha_vec = jnp.ones((C,), jnp.float32)
    elif isinstance(alpha, (float, int)):
        alpha_vec = jnp.array([float(alpha), 1.0 - float(alpha)], jnp.float32)
    else:
        alpha_vec = jnp.asarray(alpha, jnp.float32)
    if alpha_vec.shape[0] < C:
        # NOTE: behavioral divergence — the PyTorch module would index-error here;
        # we zero-pad so the in-kernel one-hot lookup stays total.
        alpha_vec = jnp.pad(alpha_vec, (0, C - alpha_vec.shape[0]))
    a_col = alpha_vec[:C].reshape(C, 1)

    # integer gamma -> integer_pow (avoids exp/log pow path)
    if float(gamma).is_integer():
        gamma = int(gamma)

    # Spatial tile: lane-dense multiple of 128, as large as the array allows
    # (multi-MiB tiles amortize the ~0.35us per-grid-step overhead).
    tn = min(_round_up(tile_hw, 128), _round_up(HW, 128))
    n_tiles = pl.cdiv(HW, tn)

    kernel = functools.partial(_focal_loss_kernel, gamma=gamma, n_valid=HW)

    per_tile = pl.pallas_call(
        kernel,
        out_shape=jax.ShapeDtypeStruct((Nb, n_tiles, 1, 1), jnp.float32),
        grid_spec=pltpu.PrefetchScalarGridSpec(
            num_scalar_prefetch=0,
            grid=(Nb, n_tiles),
            in_specs=[
                pl.BlockSpec((None, C, tn), lambda b, i: (b, 0, i)),   # logits slab
                pl.BlockSpec((None, 1, tn), lambda b, i: (b, 0, i)),   # targets
                pl.BlockSpec((C, 1), lambda b, i: (0, 0)),             # alpha table
            ],
            out_specs=pl.BlockSpec((None, None, 1, 1),
                                   lambda b, i: (b, i, 0, 0)),
        ),
        compiler_params=pltpu.CompilerParams(
            dimension_semantics=("parallel", "parallel"),
            vmem_limit_bytes=32 * 1024 * 1024),
    )(x3, t3, a_col)

    total = jnp.sum(per_tile)      # tiny: one float per (batch, tile) grid step
    return total / n_rows if size_average else total


def reference(logits, target, gamma, alpha, size_average):
    """Pure-JAX mirror of the PyTorch forward, for verification."""
    x = logits.astype(jnp.float32)
    if x.ndim > 2:
        N, C = x.shape[0], x.shape[1]
        x = x.reshape(N, C, -1).transpose(0, 2, 1).reshape(-1, C)
    t = target.reshape(-1).astype(jnp.int32)
    logp = jax.nn.log_softmax(x, axis=1)
    logpt = jnp.take_along_axis(logp, t[:, None], axis=1)[:, 0]
    pt = jnp.exp(logpt)
    if alpha is not None:
        if isinstance(alpha, (float, int)):
            a = jnp.array([float(alpha), 1.0 - float(alpha)], jnp.float32)
        else:
            a = jnp.asarray(alpha, jnp.float32)
        logpt = logpt * a[t]
    loss = -((1.0 - pt) ** gamma) * logpt
    return loss.mean() if size_average else loss.sum()


if __name__ == "__main__":
    key = jax.random.PRNGKey(0)
    k1, k2 = jax.random.split(key)

    # Segmentation-style shapes: (B, C, H, W) logits, (B, H, W) class targets.
    B, C, H, W = 2, 4, 16, 16
    gamma = 2
    alpha = [0.75, 0.25, 0.5, 1.0]

    x = 2.0 * jax.random.normal(k1, (B, C, H, W), dtype=jnp.float32)
    t = jax.random.randint(k2, (B, H, W), 0, C, dtype=jnp.int32)

    # size_average=True with per-class alpha
    loss = jax.block_until_ready(
        focal_loss(x, t, gamma=gamma, alpha=alpha, size_average=True))
    ref = reference(x, t, gamma, alpha, True)
    err = abs(float(loss) - float(ref)) / max(1.0, abs(float(ref)))
    assert err < 1e-5, f"mean/alpha mismatch: {float(loss)} vs {float(ref)} ({err})"

    # size_average=False, alpha=None path
    loss2 = jax.block_until_ready(
        focal_loss(x, t, gamma=gamma, alpha=None, size_average=False))
    ref2 = reference(x, t, gamma, None, False)
    err2 = abs(float(loss2) - float(ref2)) / max(1.0, abs(float(ref2)))
    assert err2 < 1e-5, f"sum/no-alpha mismatch: {float(loss2)} vs {float(ref2)} ({err2})"

    # float gamma path (exercises the pt<=1 clamp / lax.pow lowering)
    loss3 = jax.block_until_ready(
        focal_loss(x, t, gamma=1.5, alpha=None, size_average=True))
    ref3 = reference(x, t, 1.5, None, True)
    err3 = abs(float(loss3) - float(ref3)) / max(1.0, abs(float(ref3)))
    assert err3 < 1e-5, f"float-gamma mismatch: {float(loss3)} vs {float(ref3)} ({err3})"

    print("KERNEL_OK")
</pallas_src>

<mosaic_0001>
module attributes {stable_mosaic.version = 11 : i64} {
  func.func @_focal_loss_kernel(%arg0: i32, %arg1: i32, %arg2: memref<1x4x256xf32, #tpu.memory_space<vmem>>, %arg3: memref<1x1x256xi32, #tpu.memory_space<vmem>>, %arg4: memref<4x1xf32, #tpu.memory_space<vmem>>, %arg5: memref<1x1x1x1xf32, #tpu.memory_space<vmem>>) attributes {dimension_semantics = [#tpu.dimension_semantics<parallel>, #tpu.dimension_semantics<parallel>], iteration_bounds = array<i64: 2, 1>, scalar_prefetch = 0 : i64, scratch_operands = 0 : i64, tpu.core_type = #tpu.core_type<tc>, window_params = [{transform_indices = @transform_0, window_bounds = array<i64: 1, 4, 256>}, {transform_indices = @transform_1, window_bounds = array<i64: 1, 1, 256>}, {pipeline_mode = #tpu.pipeline_mode<synchronous>, transform_indices = @transform_2, window_bounds = array<i64: 4, 1>}, {transform_indices = @transform_3, window_bounds = array<i64: 1, 1, 1, 1>}]} {
    %c0 = arith.constant 0 : index
    %c0_0 = arith.constant 0 : index
    %c0_1 = arith.constant 0 : index
    %0 = vector.load %arg2[%c0, %c0_0, %c0_1] : memref<1x4x256xf32, #tpu.memory_space<vmem>>, vector<1x4x256xf32>
    %1 = vector.shape_cast %0 : vector<1x4x256xf32> to vector<4x256xf32>
    %c0_2 = arith.constant 0 : index
    %c0_3 = arith.constant 0 : index
    %c0_4 = arith.constant 0 : index
    %2 = vector.load %arg3[%c0_2, %c0_3, %c0_4] : memref<1x1x256xi32, #tpu.memory_space<vmem>>, vector<1x1x256xi32>
    %3 = vector.shape_cast %2 : vector<1x1x256xi32> to vector<1x256xi32>
    %cst = arith.constant dense<0xFF800000> : vector<256xf32>
    %4 = vector.multi_reduction <maximumf>, %1, %cst [0] : vector<4x256xf32> to vector<256xf32>
    %5 = vector.shape_cast %4 : vector<256xf32> to vector<1x256xf32>
    %6 = vector.broadcast %5 : vector<1x256xf32> to vector<4x256xf32>
    %7 = arith.subf %1, %6 : vector<4x256xf32>
    %8 = math.exp %7 : vector<4x256xf32>
    %cst_5 = arith.constant dense<0.000000e+00> : vector<256xf32>
    %9 = vector.multi_reduction <add>, %8, %cst_5 [0] : vector<4x256xf32> to vector<256xf32>
    %10 = vector.shape_cast %9 : vector<256xf32> to vector<1x256xf32>
    %11 = math.log %10 : vector<1x256xf32>
    %12 = arith.addf %5, %11 : vector<1x256xf32>
    %13 = tpu.iota {dimensions = array<i32: 0>} : vector<4x256xi32>
    %14 = vector.broadcast %3 : vector<1x256xi32> to vector<4x256xi32>
    %15 = arith.cmpi eq, %13, %14 : vector<4x256xi32>
    %cst_6 = arith.constant 0.000000e+00 : f32
    %16 = vector.broadcast %cst_6 : f32 to vector<4x256xf32>
    %17 = arith.select %15, %1, %16 : vector<4x256xi1>, vector<4x256xf32>
    %cst_7 = arith.constant dense<0.000000e+00> : vector<256xf32>
    %18 = vector.multi_reduction <add>, %17, %cst_7 [0] : vector<4x256xf32> to vector<256xf32>
    %19 = vector.shape_cast %18 : vector<256xf32> to vector<1x256xf32>
    %cst_8 = arith.constant 0.000000e+00 : f32
    %20 = vector.broadcast %cst_8 : f32 to vector<4x256xf32>
    %21 = arith.select %15, %8, %20 : vector<4x256xi1>, vector<4x256xf32>
    %cst_9 = arith.constant dense<0.000000e+00> : vector<256xf32>
    %22 = vector.multi_reduction <add>, %21, %cst_9 [0] : vector<4x256xf32> to vector<256xf32>
    %23 = vector.shape_cast %22 : vector<256xf32> to vector<1x256xf32>
    %c0_10 = arith.constant 0 : index
    %c0_11 = arith.constant 0 : index
    %24 = vector.load %arg4[%c0_10, %c0_11] : memref<4x1xf32, #tpu.memory_space<vmem>>, vector<4x1xf32>
    %cst_12 = arith.constant 0.000000e+00 : f32
    %25 = vector.shape_cast %24 : vector<4x1xf32> to vector<4x1xf32>
    %26 = vector.broadcast %25 : vector<4x1xf32> to vector<4x256xf32>
    %27 = vector.broadcast %cst_12 : f32 to vector<4x256xf32>
    %28 = arith.select %15, %26, %27 : vector<4x256xi1>, vector<4x256xf32>
    %cst_13 = arith.constant dense<0.000000e+00> : vector<256xf32>
    %29 = vector.multi_reduction <add>, %28, %cst_13 [0] : vector<4x256xf32> to vector<256xf32>
    %30 = vector.shape_cast %29 : vector<256xf32> to vector<1x256xf32>
    %31 = arith.subf %19, %12 : vector<1x256xf32>
    %32 = arith.divf %23, %10 : vector<1x256xf32>
    %cst_14 = arith.constant 1.000000e+00 : f32
    %33 = vector.broadcast %cst_14 : f32 to vector<1x256xf32>
    %34 = arith.minimumf %32, %33 : vector<1x256xf32>
    %cst_15 = arith.constant 1.000000e+00 : f32
    %35 = vector.broadcast %cst_15 : f32 to vector<1x256xf32>
    %36 = arith.subf %35, %34 : vector<1x256xf32>
    %37 = arith.mulf %36, %36 : vector<1x256xf32>
    %cst_16 = arith.constant 0.000000e+00 : f32
    %38 = vector.broadcast %cst_16 : f32 to vector<1x256xf32>
    %39 = arith.subf %38, %37 : vector<1x256xf32>
    %40 = arith.mulf %31, %30 : vector<1x256xf32>
    %41 = arith.mulf %39, %40 : vector<1x256xf32>
    %c256_i32 = arith.constant 256 : i32
    %42 = arith.muli %arg1, %c256_i32 : i32
    %43 = tpu.iota {dimensions = array<i32: 1>} : vector<1x256xi32>
    %44 = vector.broadcast %42 : i32 to vector<1x256xi32>
    %45 = arith.addi %44, %43 : vector<1x256xi32>
    %c256_i32_17 = arith.constant 256 : i32
    %46 = vector.broadcast %c256_i32_17 : i32 to vector<1x256xi32>
    %47 = arith.cmpi slt, %45, %46 : vector<1x256xi32>
    %cst_18 = arith.constant 0.000000e+00 : f32
    %48 = vector.broadcast %cst_18 : f32 to vector<1x256xf32>
    %49 = arith.select %47, %41, %48 : vector<1x256xi1>, vector<1x256xf32>
    %cst_19 = arith.constant dense<0.000000e+00> : vector<1xf32>
    %50 = vector.multi_reduction <add>, %49, %cst_19 [1] : vector<1x256xf32> to vector<1xf32>
    %51 = vector.shape_cast %50 : vector<1xf32> to vector<1x1xf32>
    %c0_20 = arith.constant 0 : index
    %c0_21 = arith.constant 0 : index
    %c0_22 = arith.constant 0 : index
    %c0_23 = arith.constant 0 : index
    %52 = vector.load %arg5[%c0_20, %c0_21, %c0_22, %c0_23] : memref<1x1x1x1xf32, #tpu.memory_space<vmem>>, vector<1x1x1x1xf32>
    %53 = vector.shape_cast %52 : vector<1x1x1x1xf32> to vector<1x1xf32>
    %54 = vector.shape_cast %51 : vector<1x1xf32> to vector<1x1x1x1xf32>
    tpu.vector_store %arg5[%c0_20, %c0_21, %c0_22, %c0_23], %54 {strides = array<i32>} : memref<1x1x1x1xf32, #tpu.memory_space<vmem>>, vector<1x1x1x1xf32>,
    return
  }
  func.func @transform_0(%arg0: i32, %arg1: i32) -> (i32, i32, i32) {
    %c0_i32 = arith.constant 0 : i32
    %c0_i32_0 = arith.constant 0 : i32
    return %arg0, %c0_i32, %arg1 : i32, i32, i32
  }
  func.func @transform_1(%arg0: i32, %arg1: i32) -> (i32, i32, i32) {
    %c0_i32 = arith.constant 0 : i32
    %c0_i32_0 = arith.constant 0 : i32
    return %arg0, %c0_i32, %arg1 : i32, i32, i32
  }
  func.func @transform_2(%arg0: i32, %arg1: i32) -> (i32, i32) {
    %c0_i32 = arith.constant 0 : i32
    %c0_i32_0 = arith.constant 0 : i32
    %c0_i32_1 = arith.constant 0 : i32
    return %c0_i32, %c0_i32_0 : i32, i32
  }
  func.func @transform_3(%arg0: i32, %arg1: i32) -> (i32, i32, i32, i32) {
    %c0_i32 = arith.constant 0 : i32
    %c0_i32_0 = arith.constant 0 : i32
    %c0_i32_1 = arith.constant 0 : i32
    return %arg0, %arg1, %c0_i32, %c0_i32_0 : i32, i32, i32, i32
  }
}

</mosaic_0001>

<llo_original>
// kernel: tpu_custom_call.1
$region0: #{tpu_custom_call.1}
  #allocation0 [shape = 'u32[]', space=smem, size = 0x4, offset = 0x4, fixed_abs, tag = 'smem constant byte address 0x4 - core index']
  #allocation1 [shape = 'u32[72,128]{1,0:T(1,128)}', space=vmem, size = 0x9000, scoped, tag = 'internal scratch']
  %s0 = inlined_call_operand.hbm [shape: f32[2,4,256], index: 0, kind: input, shape index: {}]
  %s1 = inlined_call_operand.vmem [shape: s32[2,1,256], index: 1, kind: input, shape index: {}]
  %s2 = inlined_call_operand.vmem [shape: f32[4,1], index: 2, kind: input, shape index: {}]
  %s3 = inlined_call_operand.vmem [shape: f32[2,1,1,1], index: 3, kind: output, shape index: {}]
  %s4 = sld [smem:[#allocation0]]
  $region49: #{tpu_custom_call.1} parent=0
    _
  %s6 = ssub.s32 1, %s4
  %s7 = scalar_select 0, %s6, %s4
  $region1: #{tpu_custom_call.1} parent=0
    #allocation2 [shape = 'u8[8192]{0}', space=vmem, size = 0x2000, scoped, tag = 'input window, operand 0']
    #allocation3 [shape = 's32[2]{0}', space=sflag, size = 0x8, scoped, tag = 'scoped memory for tpu_custom_call.1']
    %8 = vsyncpa [#allocation3], 0
    %s9 = scalar_lea.sflag [#allocation3], 1
    %10 = vsyncpa %s9, 0
    loop: start=0, step=1, limit=4
    $region2: #{tpu_custom_call.1} parent=1 // loop_pre_header
      _
    $region3: #{tpu_custom_call.1} parent=1 // loop_header
      %s12 = sphi 0, %s16
      %p13 = scmp.ge.s32.totalorder %s12, 4
      %s19 = sphi 0, %s31
      %s20 = sphi 0, %s27
      %s21 = sphi 0, %s19
      %s22 = sphi 0, %s20
      %s23 = sphi 0, %s21
      %s24 = sphi 0, %s22
      %s36 = sphi 0, %s38
      %s39 = sphi 0, %s36
      %s40 = sphi 0, %s39
      %s56 = sphi 0, %s40
      %s64 = sphi 0, %s66
      %s67 = sphi 0, %s64
      %s68 = sphi 0, %s67
      %s84 = sphi 0, %s68
      %s88 = sphi 0, %s88
      %s90 = sphi 0, %s88
      %s91 = sphi 0, %s90
      %s105 = sphi 0, %s91
      %s113 = sphi 0, %s115
      %s116 = sphi 0, %s113
      %s117 = sphi 0, %s116
      %s133 = sphi 0, %s117
    $region4: #{tpu_custom_call.1} parent=1 // loop_header_branch
      %15 = sbr.rel (%p13) target = $region8
    $region5: #{tpu_custom_call.1} parent=1 // loop_body
      %s17 = ssub.s32 %s12, 1
      %s18 = ssub.s32 %s12, 2
      %s25 = sadd.s32 1, %s20
      %p26 = scmp.ge.s32.totalorder %s25, 1
      %s27 = scalar_select %p26, 0, %s25
      %s28 = sadd.s32 1, %s19
      %s29 = scalar_select %p26, %s28, %s19
      %p30 = scmp.ge.s32.totalorder %s29, 2
      %s31 = scalar_select %p30, 0, %s29
      %s32 = ssub.s32 %s19, %s31
      %s33 = ssub.s32 %s20, %s27
      %s34 = sor.u32 %s32, %s33
      %p35 = scmp.eq.s32.totalorder %s34, 0
      %s37 = sadd.s32 %s36, 1
      %s38 = scalar_select %p35, %s36, %s37
      %p41 = pneg %p35
      %p42 = scmp.eq.s32.totalorder %s12, 1
      %p43 = por %p41, %p42
      %p44 = scmp.ne.s32.totalorder %s36, %s39
      %p45 = scmp.eq.s32.totalorder %s12, 0
      %p46 = por %p44, %p45
      %p47 = scmp.ne.s32.totalorder %s36, %s39
      %p48 = scmp.eq.s32.totalorder %s17, 1
      %p49 = por %p47, %p48
      %p50 = scmp.ne.s32.totalorder %s39, %s40
      %p51 = scmp.eq.s32.totalorder %s17, 0
      %p52 = por %p50, %p51
      %p53 = scmp.ne.s32.totalorder %s39, %s40
      %p54 = scmp.eq.s32.totalorder %s18, 1
      %p55 = por %p53, %p54
      %p57 = scmp.ne.s32.totalorder %s40, %s56
      %p58 = scmp.eq.s32.totalorder %s18, 0
      %p59 = por %p57, %p58
      %s60 = ssub.s32 %s19, %s31
      %s61 = ssub.s32 %s20, %s27
      %s62 = sor.u32 %s60, %s61
      %p63 = scmp.eq.s32.totalorder %s62, 0
      %s65 = sadd.s32 %s64, 1
      %s66 = scalar_select %p63, %s64, %s65
      %p69 = pneg %p63
      %p70 = scmp.eq.s32.totalorder %s12, 1
      %p71 = por %p69, %p70
      %p72 = scmp.ne.s32.totalorder %s64, %s67
      %p73 = scmp.eq.s32.totalorder %s12, 0
      %p74 = por %p72, %p73
      %p75 = scmp.ne.s32.totalorder %s64, %s67
      %p76 = scmp.eq.s32.totalorder %s17, 1
      %p77 = por %p75, %p76
      %p78 = scmp.ne.s32.totalorder %s67, %s68
      %p79 = scmp.eq.s32.totalorder %s17, 0
      %p80 = por %p78, %p79
      %p81 = scmp.ne.s32.totalorder %s67, %s68
      %p82 = scmp.eq.s32.totalorder %s18, 1
      %p83 = por %p81, %p82
      %p85 = scmp.ne.s32.totalorder %s68, %s84
      %p86 = scmp.eq.s32.totalorder %s18, 0
      %p87 = por %p85, %p86
      %s89 = sadd.s32 %s88, 1
      %p92 = scmp.eq.s32.totalorder %s12, 1
      %p93 = scmp.ne.s32.totalorder %s88, %s90
      %p94 = scmp.eq.s32.totalorder %s12, 0
      %p95 = por %p93, %p94
      %p96 = scmp.ne.s32.totalorder %s88, %s90
      %p97 = scmp.eq.s32.totalorder %s17, 1
      %p98 = por %p96, %p97
      %p99 = scmp.ne.s32.totalorder %s90, %s91
      %p100 = scmp.eq.s32.totalorder %s17, 0
      %p101 = por %p99, %p100
      %p102 = scmp.ne.s32.totalorder %s90, %s91
      %p103 = scmp.eq.s32.totalorder %s18, 1
      %p104 = por %p102, %p103
      %p106 = scmp.ne.s32.totalorder %s91, %s105
      %p107 = scmp.eq.s32.totalorder %s18, 0
      %p108 = por %p106, %p107
      %s109 = ssub.s32 %s19, %s31
      %s110 = ssub.s32 %s20, %s27
      %s111 = sor.u32 %s109, %s110
      %p112 = scmp.eq.s32.totalorder %s111, 0
      %s114 = sadd.s32 %s113, 1
      %s115 = scalar_select %p112, %s113, %s114
      %p118 = pneg %p112
      %p119 = scmp.eq.s32.totalorder %s12, 1
      %p120 = por %p118, %p119
      %p121 = scmp.ne.s32.totalorder %s113, %s116
      %p122 = scmp.eq.s32.totalorder %s12, 0
      %p123 = por %p121, %p122
      %p124 = scmp.ne.s32.totalorder %s113, %s116
      %p125 = scmp.eq.s32.totalorder %s17, 1
      %p126 = por %p124, %p125
      %p127 = scmp.ne.s32.totalorder %s116, %s117
      %p128 = scmp.eq.s32.totalorder %s17, 0
      %p129 = por %p127, %p128
      %p130 = scmp.ne.s32.totalorder %s116, %s117
      %p131 = scmp.eq.s32.totalorder %s18, 1
      %p132 = por %p130, %p131
      %p134 = scmp.ne.s32.totalorder %s117, %s133
      %p135 = scmp.eq.s32.totalorder %s18, 0
      %p136 = por %p134, %p135
      %p137 = scmp.le.s32.totalorder 1, %s12
      %p138 = scmp.lt.s32.totalorder %s12, 3
      %p139 = pnand %p137, %p138
      %p140 = pneg %p139
      // Predicated region
      $region9: #{tpu_custom_call.1} parent=5 // pred_check
        _
      $region10: #{tpu_custom_call.1} parent=5 // pred_check_branch
        %142 = sbr.rel (%p139) target = $region12
      $region11: #{tpu_custom_call.1} parent=5 // pred_region
        %s143 = ssub.s32 %s12, 1
        // Predicated region
        $region13: #{tpu_custom_call.1} parent=11 // pred_check
          %p144 = pneg %p101
        $region14: #{tpu_custom_call.1} parent=11 // pred_check_branch
          %146 = sbr.rel (%p144) target = $region16
        $region15: #{tpu_custom_call.1} parent=11 // pred_region
          _
        $region16: #{tpu_custom_call.1} parent=11 // pred_fallthru
          _
      $region12: #{tpu_custom_call.1} parent=5 // pred_fallthru
        _
      %p147 = scmp.lt.s32.totalorder %s12, 2
      // Predicated region
      $region17: #{tpu_custom_call.1} parent=5 // pred_check
        %p148 = pneg %p147
      $region18: #{tpu_custom_call.1} parent=5 // pred_check_branch
        %150 = sbr.rel (%p148) target = $region20
      $region19: #{tpu_custom_call.1} parent=5 // pred_region
        // Predicated region
        $region21: #{tpu_custom_call.1} parent=19 // pred_check
          %p151 = pneg %p46
        $region22: #{tpu_custom_call.1} parent=19 // pred_check_branch
          %153 = sbr.rel (%p151) target = $region24
        $region23: #{tpu_custom_call.1} parent=19 // pred_region
          %s154 = sand.u32 %s36, 1
          %s155 = scalar_lea.sflag [#allocation3], %s154
          %s156 = sand.u32 %s36, 1
          %s157 = smul.addr %s156, 8
          %s158 = scalar_lea.vmem [#allocation2], %s157
          %s159 = smul.u32 2, %s20
          %161 = vsyncadd %s155, 0
          %s162 = smul.addr %s19, 2
          %s163 = sadd.s32 %s159, %s162
          %s164 = smul.addr %s163, 4
          %s165 = scalar_lea.hbm %s0, %s164
          %s167 = sshll.u32 %s165, 4
          %s168 = int_to_ptr.hbm [resolvable:$true] %s167
          %s169 = sshll.u32 %s158, 4
          %s170 = int_to_ptr.vmem [resolvable:$true] %s169
          %172 = dma.hbm_to_vmem [thread:$0]  %s168, 128, %s170, %s155
        $region24: #{tpu_custom_call.1} parent=19 // pred_fallthru
          _
        // Predicated region
        $region25: #{tpu_custom_call.1} parent=19 // pred_check
          %p173 = pneg %p74
        $region26: #{tpu_custom_call.1} parent=19 // pred_check_branch
          %175 = sbr.rel (%p173) target = $region28
        $region27: #{tpu_custom_call.1} parent=19 // pred_region
          %s176 = smul.u32 2, %s20
          %p177 = scmp.lt.s32.totalorder %s19, 1
          %s178 = scalar_select %p177, %s19, 1
          %p179 = scmp.lt.s32.totalorder %s176, 1
          %s180 = scalar_select %p179, %s176, 1
          %s181 = smul.addr %s178, 2
          %s182 = sadd.s32 %s180, %s181
          %s183 = scalar_lea.vmem %s1, %s182
          %s184 = smul.u32 2, %s20
        $region28: #{tpu_custom_call.1} parent=19 // pred_fallthru
          _
      $region20: #{tpu_custom_call.1} parent=5 // pred_fallthru
        _
      %p185 = scmp.le.s32.totalorder 1, %s12
      %p186 = scmp.lt.s32.totalorder %s12, 3
      %p187 = pnand %p185, %p186
      %p188 = pneg %p187
      // Predicated region
      $region29: #{tpu_custom_call.1} parent=5 // pred_check
        _
      $region30: #{tpu_custom_call.1} parent=5 // pred_check_branch
        %190 = sbr.rel (%p187) target = $region32
      $region31: #{tpu_custom_call.1} parent=5 // pred_region
        %s191 = ssub.s32 %s12, 1
        %s192 = sand.u32 %s39, 1
        %s193 = scalar_lea.sflag [#allocation3], %s192
        %s194 = sand.u32 %s39, 1
        %s195 = smul.addr %s194, 8
        %s196 = scalar_lea.vmem [#allocation2], %s195
        // Predicated region
        $region33: #{tpu_custom_call.1} parent=31 // pred_check
          %p197 = pneg %p52
        $region34: #{tpu_custom_call.1} parent=31 // pred_check_branch
          %199 = sbr.rel (%p197) target = $region36
        $region35: #{tpu_custom_call.1} parent=31 // pred_region
          %201 = dma.done %s193, 128
        $region36: #{tpu_custom_call.1} parent=31 // pred_fallthru
          _
        %s202 = sand.u32 %s39, 1
        %s203 = scalar_lea.sflag [#allocation3], %s202
        %s204 = sand.u32 %s39, 1
        %s205 = smul.addr %s204, 8
        %s206 = scalar_lea.vmem [#allocation2], %s205
        %p207 = pneg %p52
        %p208 = pneg %p49
        %s209 = smul.u32 2, %s22
        %p210 = scmp.lt.s32.totalorder %s21, 1
        %s211 = scalar_select %p210, %s21, 1
        %p212 = scmp.lt.s32.totalorder %s209, 1
        %s213 = scalar_select %p212, %s209, 1
        %s214 = smul.addr %s211, 2
        %s215 = sadd.s32 %s213, %s214
        %s216 = scalar_lea.vmem %s1, %s215
        %p217 = pneg %p80
        %p218 = pneg %p77
        %p219 = pneg %p101
        %p220 = pneg %p98
        %p221 = pneg %p129
        %p222 = pneg %p126
        %p223 = scmp.lt.s32.totalorder %s21, 1
        %s224 = scalar_select %p223, %s21, 1
        %p225 = scmp.lt.s32.totalorder %s22, 0
        %s226 = scalar_select %p225, %s22, 0
        %s227 = sadd.s32 %s226, %s224
        %s228 = scalar_lea.vmem %s3, %s227
        %s229 = smul.u32 2, %s22
        %s230 = smul.u32 2, %s22
        %p231 = scmp.lt.s32.totalorder %s21, 1
        %s232 = scalar_select %p231, %s21, 1
        %p233 = scmp.lt.s32.totalorder %s230, 1
        %s234 = scalar_select %p233, %s230, 1
        %s235 = smul.addr %s232, 2
        %s236 = sadd.s32 %s234, %s235
        %s237 = scalar_lea.vmem %s1, %s236
        %s238 = smul.u32 2, %s22
        %p239 = scmp.lt.s32.totalorder %s21, 1
        %s240 = scalar_select %p239, %s21, 1
        %p241 = scmp.lt.s32.totalorder %s22, 0
        %s242 = scalar_select %p241, %s22, 0
        %s243 = sadd.s32 %s242, %s240
        %s244 = scalar_lea.vmem %s3, %s243
        %v245 = vld [vmem:[%s196] sm:$0xff]
        %v246 = vld [vmem:[%s237] sm:$0x3]
        %248 = vst [vmem:[#allocation1] ss:$2 sm:$0xff] %v245
        %v249 = vld.sshfl [vmem:[#allocation1] sm:$0xff pattern:$0x75316420]
        %v250 = vld.sshfl [vmem:[#allocation1 + $0x8] sm:$0xff pattern:$0x75316420]
        %vm253 = vcmask 1043456
        %v254 = vsel %vm253, %v249, -inf
        %v255 = vrot.slane %v254, 4
        %v256 = vmax.f32 %v254, %v255
        %v257 = vrot.slane %v256, 2
        %v258 = vmax.f32 %v256, %v257
        %v259 = vrot.slane %v258, 1
        %v260 = vmax.f32 %v258, %v259
        %v261 = vsel %vm253, %v250, -inf
        %v262 = vrot.slane %v261, 4
        %v263 = vmax.f32 %v261, %v262
        %v264 = vrot.slane %v263, 2
        %v265 = vmax.f32 %v263, %v264
        %v266 = vrot.slane %v265, 1
        %v267 = vmax.f32 %v265, %v266
        %v270 = vrot.slane %v267, 4
        %v271 = vsel %vm253, %v260, %v270
        %v273 = vsub.f32 %v245, %v271
        %v274 = vmul.f32 %v273, 1.442695
        %v275 = vpow.pop %v274
        %277 = vst [vmem:[#allocation1] ss:$2 sm:$0xff] %v275
        %v278 = vld.sshfl [vmem:[#allocation1] sm:$0xff pattern:$0x75316420]
        %v279 = vld.sshfl [vmem:[#allocation1 + $0x8] sm:$0xff pattern:$0x75316420]
        %v282 = vsel %vm253, %v278, 0.0
        %v283 = vrot.slane %v282, 4
        %v284 = vadd.f32 %v282, %v283
        %v285 = vrot.slane %v284, 2
        %v286 = vadd.f32 %v284, %v285
        %v287 = vrot.slane %v286, 1
        %v288 = vadd.f32 %v286, %v287
        %v289 = vsel %vm253, %v279, 0.0
        %v290 = vrot.slane %v289, 4
        %v291 = vadd.f32 %v289, %v290
        %v292 = vrot.slane %v291, 2
        %v293 = vadd.f32 %v291, %v292
        %v294 = vrot.slane %v293, 1
        %v295 = vadd.f32 %v293, %v294
        %v296 = vlog2.pop %v288
        %v297 = vmul.f32 %v296, 0.6931472
        %v298 = vlog2.pop %v295
        %v299 = vmul.f32 %v298, 0.6931472
        %v300 = vadd.f32 %v260, %v297
        %v301 = vadd.f32 %v267, %v299
        %v302 = vlaneseq
        %v303 = vshrl.u32 %v302, 7
        %v304 = vperm.slane %v246, 0
        %v305 = vperm.slane %v246, 1
        %vm306 = vcmp.eq.s32.totalorder %v303, %v304
        %vm307 = vcmp.eq.s32.totalorder %v303, %v305
        %308 = vst [vmem:[#allocation1] ss:$2 sm:$0xff] %v245
        %v309 = vld.sshfl [vmem:[#allocation1] sm:$0xff pattern:$0x75316420]
        %v310 = vld.sshfl [vmem:[#allocation1 + $0x8] sm:$0xff pattern:$0x75316420]
        %v313 = vsel %vm306, %v309, 0.0
        %v314 = vsel %vm307, %v310, 0.0
        %v315 = vsel %vm253, %v313, 0.0
        %v316 = vrot.slane %v315, 4
        %v317 = vadd.f32 %v315, %v316
        %v318 = vrot.slane %v317, 2
        %v319 = vadd.f32 %v317, %v318
        %v320 = vrot.slane %v319, 1
        %v321 = vadd.f32 %v319, %v320
        %v322 = vsel %vm253, %v314, 0.0
        %v323 = vrot.slane %v322, 4
        %v324 = vadd.f32 %v322, %v323
        %v325 = vrot.slane %v324, 2
        %v326 = vadd.f32 %v324, %v325
        %v327 = vrot.slane %v326, 1
        %v328 = vadd.f32 %v326, %v327
        %329 = vst [vmem:[#allocation1] ss:$2 sm:$0xff] %v275
        %v330 = vld.sshfl [vmem:[#allocation1] sm:$0xff pattern:$0x75316420]
        %v331 = vld.sshfl [vmem:[#allocation1 + $0x8] sm:$0xff pattern:$0x75316420]
        %v334 = vsel %vm306, %v330, 0.0
        %v335 = vsel %vm307, %v331, 0.0
        %v336 = vsel %vm253, %v334, 0.0
        %v337 = vrot.slane %v336, 4
        %v338 = vadd.f32 %v336, %v337
        %v339 = vrot.slane %v338, 2
        %v340 = vadd.f32 %v338, %v339
        %v341 = vrot.slane %v340, 1
        %v342 = vadd.f32 %v340, %v341
        %v343 = vsel %vm253, %v335, 0.0
        %v344 = vrot.slane %v343, 4
        %v345 = vadd.f32 %v343, %v344
        %v346 = vrot.slane %v345, 2
        %v347 = vadd.f32 %v345, %v346
        %v348 = vrot.slane %v347, 1
        %v349 = vadd.f32 %v347, %v348
        %v350 = vld [vmem:[%s2] sm:$0xf]
        %352 = vset.pattern.permute.xlu0 0
        %353 = vperm.xlu0 %352, %v350
        %v354 = vpop.permute.xlu0 %353
        %v356 = vsel %vm306, %v354, 0.0
        %v357 = vsel %vm307, %v354, 0.0
        %v358 = vsel %vm253, %v356, 0.0
        %v359 = vrot.slane %v358, 4
        %v360 = vadd.f32 %v358, %v359
        %v361 = vrot.slane %v360, 2
        %v362 = vadd.f32 %v360, %v361
        %v363 = vrot.slane %v362, 1
        %v364 = vadd.f32 %v362, %v363
        %v365 = vsel %vm253, %v357, 0.0
        %v366 = vrot.slane %v365, 4
        %v367 = vadd.f32 %v365, %v366
        %v368 = vrot.slane %v367, 2
        %v369 = vadd.f32 %v367, %v368
        %v370 = vrot.slane %v369, 1
        %v371 = vadd.f32 %v369, %v370
        %v372 = vsub.f32 %v321, %v300
        %v373 = vsub.f32 %v328, %v301
        %v374 = vrcp.pop %v288
        %v375 = vmul.f32 %v288, %v374
        %v376 = vsub.f32 1.0, %v375
        %v377 = vmul.f32 %v374, %v376
        %v378 = vadd.f32 %v374, %v377
        %vm379 = vweird.f32 %v288
        %vm380 = vweird.f32 %v374
        %vm381 = vmor %vm379, %vm380
        %v382 = vsel %vm381, %v374, %v378
        %v383 = vand.u32 2147483647, %v288
        %vm384 = vcmp.eq.f32.partialorder %v383, 8.507059e+37
        %v385 = vand.u32 %v288, 2147483648
        %v386 = vor.u32 1.1754944e-38, %v385
        %v387 = vsel %vm384, %v386, %v382
        %v388 = vmul.f32 %v342, %v387
        %v389 = vrcp.pop %v295
        %v390 = vmul.f32 %v295, %v389
        %v391 = vsub.f32 1.0, %v390
        %v392 = vmul.f32 %v389, %v391
        %v393 = vadd.f32 %v389, %v392
        %vm394 = vweird.f32 %v295
        %vm395 = vweird.f32 %v389
        %vm396 = vmor %vm394, %vm395
        %v397 = vsel %vm396, %v389, %v393
        %v398 = vand.u32 2147483647, %v295
        %vm399 = vcmp.eq.f32.partialorder %v398, 8.507059e+37
        %v400 = vand.u32 %v295, 2147483648
        %v401 = vor.u32 1.1754944e-38, %v400
        %v402 = vsel %vm399, %v401, %v397
        %v403 = vmul.f32 %v349, %v402
        %v404 = vmin.f32 %v388, 1.0
        %v405 = vmin.f32 %v403, 1.0
        %v406 = vsub.f32 1.0, %v404
        %v407 = vsub.f32 1.0, %v405
        %v408 = vmul.f32 %v406, %v406
        %v409 = vmul.f32 %v407, %v407
        %v410 = vsub.f32 0.0, %v408
        %v411 = vsub.f32 0.0, %v409
        %v412 = vmul.f32 %v372, %v364
        %v413 = vmul.f32 %v373, %v371
        %v414 = vmul.f32 %v410, %v412
        %v415 = vmul.f32 %v411, %v413
        %s416 = smul.u32 %s22, 256
        %v417 = vlaneseq
        %v418 = vand.u32 %v417, 127
        %v419 = vadd.s32 %v418, 128
        %v420 = vstv %s416
        %v421 = vadd.s32 %v420, %v418
        %v422 = vadd.s32 %v420, %v419
        %vm423 = vcmp.lt.s32.totalorder %v421, 256
        %vm424 = vcmp.lt.s32.totalorder %v422, 256
        %v425 = vsel %vm423, %v414, 0.0
        %v426 = vsel %vm424, %v415, 0.0
        %v427 = vadd.f32 %v425, %v426
        %428 = vadd.xlane.f32.xlu0 %v427
        %v429 = vpop.xlane.xlu0 %428
        %vm430 = vcmask 0
        %431 = vst.msk [vmem:[%s244] sm:$0x1] %vm430, %v429
        %p432 = scmp.lt.s32.totalorder %s21, 1
        %s433 = scalar_select %p432, %s21, 1
        %p434 = scmp.lt.s32.totalorder %s22, 0
        %s435 = scalar_select %p434, %s22, 0
        %s436 = sadd.s32 %s435, %s433
        %s437 = scalar_lea.vmem %s3, %s436
        // Predicated region
        $region37: #{tpu_custom_call.1} parent=31 // pred_check
          %p438 = pneg %p126
        $region38: #{tpu_custom_call.1} parent=31 // pred_check_branch
          %440 = sbr.rel (%p438) target = $region40
        $region39: #{tpu_custom_call.1} parent=31 // pred_region
          _
        $region40: #{tpu_custom_call.1} parent=31 // pred_fallthru
          _
      $region32: #{tpu_custom_call.1} parent=5 // pred_fallthru
        _
      %p441 = scmp.le.s32.totalorder 2, %s12
      // Predicated region
      $region41: #{tpu_custom_call.1} parent=5 // pred_check
        %p442 = pneg %p441
      $region42: #{tpu_custom_call.1} parent=5 // pred_check_branch
        %444 = sbr.rel (%p442) target = $region44
      $region43: #{tpu_custom_call.1} parent=5 // pred_region
        %s445 = ssub.s32 %s12, 2
        // Predicated region
        $region45: #{tpu_custom_call.1} parent=43 // pred_check
          %p446 = pneg %p132
        $region46: #{tpu_custom_call.1} parent=43 // pred_check_branch
          %448 = sbr.rel (%p446) target = $region48
        $region47: #{tpu_custom_call.1} parent=43 // pred_region
          %p449 = scmp.lt.s32.totalorder %s23, 1
          %s450 = scalar_select %p449, %s23, 1
          %p451 = scmp.lt.s32.totalorder %s24, 0
          %s452 = scalar_select %p451, %s24, 0
          %s453 = sadd.s32 %s452, %s450
          %s454 = scalar_lea.vmem %s3, %s453
        $region48: #{tpu_custom_call.1} parent=43 // pred_fallthru
          _
      $region44: #{tpu_custom_call.1} parent=5 // pred_fallthru
        _
    $region6: #{tpu_custom_call.1} parent=1 // loop_footer
      %s16 = sadd.s32 1, %s12
    $region7: #{tpu_custom_call.1} parent=1 // loop_footer_branch
      %11 = sbr.rel target = $region3
    $region8: #{tpu_custom_call.1} parent=1 // loop_exit
      _
    %455 = vsyncpa [#allocation3], 1
    %s456 = scalar_lea.sflag [#allocation3], 1
    %457 = vsyncpa %s456, 1

</llo_original>
